<compile_context>
chip_gen: v5e
topology: v5e:2x2
jax: 0.10.0
libtpu: 0.0.40
codegen_flags: <defaults>
</compile_context>

<pallas_src>
import jax
import jax.numpy as jnp
from jax.experimental import pallas as pl
from jax.experimental.pallas import tpu as pltpu

Z_DIM = 4
NS = 16          # NS is not defined in the original snippet; fixed small here.
HID = 32
OUT = 3 * NS     # 48

PACK = 8                 # logical rows packed per physical row (keep at 8)
Z_IN = PACK * Z_DIM      # 32   packed input width
H_P = PACK * HID         # 256  packed hidden width
O_P = 3 * PACK * NS      # 384  packed output width (3 x 128 -> lane-dense)

TBP_MAX = 512            # max row tile in PACKED rows (= 4096 logical rows)


def _round_up(x, m):
    return (x + m - 1) // m * m


def _decoder_kernel(z_ref, w1_ref, b1_ref, w2_ref, b2_ref, out_ref):
    # fc1 + ReLU on the packed / block-diagonal weights.
    z = z_ref[...]                                                   # (tb, 32)
    h1 = jnp.dot(z, w1_ref[...], preferred_element_type=jnp.float32) + b1_ref[...]
    h1 = jnp.maximum(h1, 0.0)                                        # (tb, 256)

    # fc2 -> channel-major packed logits: lane 128*c + 16*r + n holds channel c
    # of logical row r, position n.
    h2 = jnp.dot(h1, w2_ref[...], preferred_element_type=jnp.float32) + b2_ref[...]

    L = PACK * NS                                                    # 128
    a = h2[:, 0 * L:1 * L]     # 128-lane-aligned slices: free vreg selection
    b = h2[:, 1 * L:2 * L]
    c = h2[:, 2 * L:3 * L]

    # Softmax over the channel axis (elementwise across the three slices).
    m = jnp.maximum(jnp.maximum(a, b), c)
    ea = jnp.exp(a - m)
    eb = jnp.exp(b - m)
    ec = jnp.exp(c - m)
    inv = 1.0 / (ea + eb + ec)   # exact divide: rows sum to 1 within f32 eps
    pa = ea * inv
    pb = eb * inv
    pc = ec * inv

    # Interleave (channel, row, n) -> (row, channel, n): the row-major HBM
    # layout of the (Bp, 384) output then reshapes for free to (B, 3, NS).
    # 24 static 16-lane slices + one concat: XLU/VALU work on non-MXU slots.
    parts = []
    for r in range(PACK):
        parts.append(pa[:, r * NS:(r + 1) * NS])
        parts.append(pb[:, r * NS:(r + 1) * NS])
        parts.append(pc[:, r * NS:(r + 1) * NS])
    out_ref[...] = jnp.concatenate(parts, axis=-1)                   # (tb, 384)


def _pack_params(w1, b1, w2, b2):
    """Build the 8-way block-diagonal weights (one-time, ~130 KiB total)."""
    w1 = jnp.asarray(w1, jnp.float32)
    w2 = jnp.asarray(w2, jnp.float32)
    b1 = jnp.asarray(b1, jnp.float32).reshape(-1)
    b2 = jnp.asarray(b2, jnp.float32).reshape(-1)

    w1p = jnp.zeros((Z_IN, H_P), jnp.float32)
    for r in range(PACK):
        w1p = w1p.at[r * Z_DIM:(r + 1) * Z_DIM, r * HID:(r + 1) * HID].set(w1)
    b1p = jnp.tile(b1, PACK).reshape(1, H_P)

    # fc2 output columns grouped channel-major: packed column = 128*c + 16*r + n.
    w2p = jnp.zeros((H_P, O_P), jnp.float32)
    b2p = jnp.zeros((1, O_P), jnp.float32)
    for cix in range(3):
        w2_c = w2[:, cix * NS:(cix + 1) * NS]
        b2_c = b2[cix * NS:(cix + 1) * NS]
        for r in range(PACK):
            col0 = cix * PACK * NS + r * NS
            w2p = w2p.at[r * HID:(r + 1) * HID, col0:col0 + NS].set(w2_c)
            b2p = b2p.at[0, col0:col0 + NS].set(b2_c)
    return w1p, b1p, w2p, b2p


def decoder_forward(z, w1, b1, w2, b2, *, tb=None):
    """z: (B, Z_DIM) f32 -> (B, 3, NS) f32, softmax over axis 1.

    tb (optional): row tile in LOGICAL rows; defaults to up to ~4096 logical
    rows per grid step with minimal padding.
    """
    B = z.shape[0]
    # 8-way packing needs B to be a multiple of PACK; pad at most 7 rows.
    b_pack = _round_up(max(B, 1), PACK)
    if b_pack != B:
        z = jnp.pad(z, ((0, b_pack - B), (0, 0)))
    Bp = b_pack // PACK
    zp = z.reshape(Bp, Z_IN)          # zero-copy row-major reinterpretation

    w1p, b1p, w2p, b2p = _pack_params(w1, b1, w2, b2)

    # Tile selection (in packed rows): largest tile <= TBP_MAX with minimal
    # waste; the ragged last block is write-masked by Pallas (no jnp.pad).
    tbp_target = TBP_MAX if tb is None else max(1, tb // PACK)
    if Bp <= tbp_target:
        tbp = Bp                                    # single exact tile
    else:
        n_tiles = pl.cdiv(Bp, tbp_target)
        tbp = _round_up(pl.cdiv(Bp, n_tiles), 8)    # sublane-aligned
    grid = (pl.cdiv(Bp, tbp),)

    cost = pl.CostEstimate(
        flops=2 * Bp * (Z_IN * H_P + H_P * O_P),
        transcendentals=Bp * O_P,
        bytes_accessed=4 * (Bp * (Z_IN + O_P)
                            + Z_IN * H_P + H_P + H_P * O_P + O_P),
    )

    out_packed = pl.pallas_call(
        _decoder_kernel,
        out_shape=jax.ShapeDtypeStruct((Bp, O_P), jnp.float32),
        grid=grid,
        in_specs=[
            pl.BlockSpec((tbp, Z_IN), lambda i: (i, 0)),
            # Weights / biases: constant block index -> VMEM-resident across
            # the whole grid, no per-step re-DMA.
            pl.BlockSpec((Z_IN, H_P), lambda i: (0, 0)),
            pl.BlockSpec((1, H_P), lambda i: (0, 0)),
            pl.BlockSpec((H_P, O_P), lambda i: (0, 0)),
            pl.BlockSpec((1, O_P), lambda i: (0, 0)),
        ],
        out_specs=pl.BlockSpec((tbp, O_P), lambda i: (i, 0)),
        compiler_params=pltpu.CompilerParams(
            dimension_semantics=("parallel",)),
        cost_estimate=cost,
    )(zp, w1p, b1p, w2p, b2p)

    # Free reshape: packed row-major [r0:a|b|c, r1:a|b|c, ...] == (B, 3, NS).
    out = out_packed.reshape(b_pack, 3, NS)
    if b_pack != B:
        out = out[:B]       # only on the (rare) B % 8 != 0 path
    return out


def init_params(key):
    """Mimic nn.Linear's U(-1/sqrt(fan_in), +1/sqrt(fan_in)) init (weights pre-transposed)."""
    k1, k2, k3, k4 = jax.random.split(key, 4)
    s1 = 1.0 / jnp.sqrt(Z_DIM)
    s2 = 1.0 / jnp.sqrt(HID)
    w1 = jax.random.uniform(k1, (Z_DIM, HID), jnp.float32, -s1, s1)
    b1 = jax.random.uniform(k2, (HID,), jnp.float32, -s1, s1)
    w2 = jax.random.uniform(k3, (HID, OUT), jnp.float32, -s2, s2)
    b2 = jax.random.uniform(k4, (OUT,), jnp.float32, -s2, s2)
    return w1, b1, w2, b2


def decoder_reference(z, w1, b1, w2, b2):
    h1 = jnp.maximum(z @ w1 + b1, 0.0)
    h2 = (h1 @ w2 + b2).reshape(-1, 3, NS)
    return jax.nn.softmax(h2, axis=1)


if __name__ == "__main__":
    key = jax.random.PRNGKey(0)
    kz1, kz2, kz3, kp = jax.random.split(key, 4)
    w1, b1, w2, b2 = init_params(kp)

    # Small shape (B=8 -> 1 packed row, single tile).
    B = 8
    z = jax.random.normal(kz1, (B, Z_DIM), dtype=jnp.float32)
    out = jax.block_until_ready(decoder_forward(z, w1, b1, w2, b2))
    ref = decoder_reference(z, w1, b1, w2, b2)
    assert out.shape == (B, 3, NS)
    assert jnp.allclose(out, ref, atol=2e-3, rtol=2e-3), "mismatch vs JAX reference"
    # Exact softmax divide -> each (batch, NS) column sums to 1 over the 3 channels.
    assert jnp.allclose(out.sum(axis=1), jnp.ones((B, NS)), atol=1e-5)

    # Multi-tile gridded path (tb=128 logical rows -> 16 packed rows per tile).
    B2 = 512
    z2 = jax.random.normal(kz2, (B2, Z_DIM), dtype=jnp.float32)
    out2 = jax.block_until_ready(decoder_forward(z2, w1, b1, w2, b2, tb=128))
    ref2 = decoder_reference(z2, w1, b1, w2, b2)
    assert out2.shape == (B2, 3, NS)
    assert jnp.allclose(out2, ref2, atol=2e-3, rtol=2e-3), "mismatch (gridded path)"
    assert jnp.allclose(out2.sum(axis=1), jnp.ones((B2, NS)), atol=1e-5)

    # Ragged path: B not a multiple of 8, and a partial (write-masked) last block.
    B3 = 300
    z3 = jax.random.normal(kz3, (B3, Z_DIM), dtype=jnp.float32)
    out3 = jax.block_until_ready(decoder_forward(z3, w1, b1, w2, b2, tb=128))
    ref3 = decoder_reference(z3, w1, b1, w2, b2)
    assert out3.shape == (B3, 3, NS)
    assert jnp.allclose(out3, ref3, atol=2e-3, rtol=2e-3), "mismatch (ragged path)"

    print("KERNEL_OK")
</pallas_src>

<mosaic_0001>
module attributes {stable_mosaic.version = 11 : i64} {
  func.func @_decoder_kernel(%arg0: i32, %arg1: memref<1x32xf32, #tpu.memory_space<vmem>>, %arg2: memref<32x256xf32, #tpu.memory_space<vmem>>, %arg3: memref<1x256xf32, #tpu.memory_space<vmem>>, %arg4: memref<256x384xf32, #tpu.memory_space<vmem>>, %arg5: memref<1x384xf32, #tpu.memory_space<vmem>>, %arg6: memref<1x384xf32, #tpu.memory_space<vmem>>) attributes {dimension_semantics = [#tpu.dimension_semantics<parallel>], iteration_bounds = array<i64: 1>, scalar_prefetch = 0 : i64, scratch_operands = 0 : i64, tpu.core_type = #tpu.core_type<tc>, window_params = [{transform_indices = @transform_0, window_bounds = array<i64: 1, 32>}, {pipeline_mode = #tpu.pipeline_mode<synchronous>, transform_indices = @transform_1, window_bounds = array<i64: 32, 256>}, {pipeline_mode = #tpu.pipeline_mode<synchronous>, transform_indices = @transform_2, window_bounds = array<i64: 1, 256>}, {pipeline_mode = #tpu.pipeline_mode<synchronous>, transform_indices = @transform_3, window_bounds = array<i64: 256, 384>}, {pipeline_mode = #tpu.pipeline_mode<synchronous>, transform_indices = @transform_4, window_bounds = array<i64: 1, 384>}, {transform_indices = @transform_5, window_bounds = array<i64: 1, 384>}]} {
    %c0 = arith.constant 0 : index
    %c0_0 = arith.constant 0 : index
    %0 = vector.load %arg1[%c0, %c0_0] : memref<1x32xf32, #tpu.memory_space<vmem>>, vector<1x32xf32>
    %c0_1 = arith.constant 0 : index
    %c0_2 = arith.constant 0 : index
    %1 = vector.load %arg2[%c0_1, %c0_2] : memref<32x256xf32, #tpu.memory_space<vmem>>, vector<32x256xf32>
    %cst = arith.constant dense<0.000000e+00> : vector<1x256xf32>
    %2 = tpu.matmul %0, %1, %cst {dimension_numbers = #tpu.dot_dimension_numbers<[1], [0], [0], [1], [0, 0, 1, 1], [], []>} : vector<1x32xf32>, vector<32x256xf32>, vector<1x256xf32> -> vector<1x256xf32>
    %c0_3 = arith.constant 0 : index
    %c0_4 = arith.constant 0 : index
    %3 = vector.load %arg3[%c0_3, %c0_4] : memref<1x256xf32, #tpu.memory_space<vmem>>, vector<1x256xf32>
    %4 = arith.addf %2, %3 : vector<1x256xf32>
    %cst_5 = arith.constant 0.000000e+00 : f32
    %5 = vector.broadcast %cst_5 : f32 to vector<1x256xf32>
    %6 = arith.maximumf %4, %5 : vector<1x256xf32>
    %c0_6 = arith.constant 0 : index
    %c0_7 = arith.constant 0 : index
    %7 = vector.load %arg4[%c0_6, %c0_7] : memref<256x384xf32, #tpu.memory_space<vmem>>, vector<256x384xf32>
    %cst_8 = arith.constant dense<0.000000e+00> : vector<1x384xf32>
    %8 = tpu.matmul %6, %7, %cst_8 {dimension_numbers = #tpu.dot_dimension_numbers<[1], [0], [0], [1], [0, 0, 1, 1], [], []>} : vector<1x256xf32>, vector<256x384xf32>, vector<1x384xf32> -> vector<1x384xf32>
    %c0_9 = arith.constant 0 : index
    %c0_10 = arith.constant 0 : index
    %9 = vector.load %arg5[%c0_9, %c0_10] : memref<1x384xf32, #tpu.memory_space<vmem>>, vector<1x384xf32>
    %10 = arith.addf %8, %9 : vector<1x384xf32>
    %11 = vector.extract_strided_slice %10 {offsets = [0, 0], sizes = [1, 128], strides = [1, 1]} : vector<1x384xf32> to vector<1x128xf32>
    %12 = vector.extract_strided_slice %10 {offsets = [0, 128], sizes = [1, 128], strides = [1, 1]} : vector<1x384xf32> to vector<1x128xf32>
    %13 = vector.extract_strided_slice %10 {offsets = [0, 256], sizes = [1, 128], strides = [1, 1]} : vector<1x384xf32> to vector<1x128xf32>
    %14 = arith.maximumf %11, %12 : vector<1x128xf32>
    %15 = arith.maximumf %14, %13 : vector<1x128xf32>
    %16 = arith.subf %11, %15 : vector<1x128xf32>
    %17 = math.exp %16 : vector<1x128xf32>
    %18 = arith.subf %12, %15 : vector<1x128xf32>
    %19 = math.exp %18 : vector<1x128xf32>
    %20 = arith.subf %13, %15 : vector<1x128xf32>
    %21 = math.exp %20 : vector<1x128xf32>
    %22 = arith.addf %17, %19 : vector<1x128xf32>
    %23 = arith.addf %22, %21 : vector<1x128xf32>
    %cst_11 = arith.constant 1.000000e+00 : f32
    %24 = vector.broadcast %cst_11 : f32 to vector<1x128xf32>
    %25 = arith.divf %24, %23 : vector<1x128xf32>
    %26 = arith.mulf %17, %25 : vector<1x128xf32>
    %27 = arith.mulf %19, %25 : vector<1x128xf32>
    %28 = arith.mulf %21, %25 : vector<1x128xf32>
    %29 = vector.extract_strided_slice %26 {offsets = [0, 0], sizes = [1, 16], strides = [1, 1]} : vector<1x128xf32> to vector<1x16xf32>
    %30 = vector.extract_strided_slice %27 {offsets = [0, 0], sizes = [1, 16], strides = [1, 1]} : vector<1x128xf32> to vector<1x16xf32>
    %31 = vector.extract_strided_slice %28 {offsets = [0, 0], sizes = [1, 16], strides = [1, 1]} : vector<1x128xf32> to vector<1x16xf32>
    %32 = vector.extract_strided_slice %26 {offsets = [0, 16], sizes = [1, 16], strides = [1, 1]} : vector<1x128xf32> to vector<1x16xf32>
    %33 = vector.extract_strided_slice %27 {offsets = [0, 16], sizes = [1, 16], strides = [1, 1]} : vector<1x128xf32> to vector<1x16xf32>
    %34 = vector.extract_strided_slice %28 {offsets = [0, 16], sizes = [1, 16], strides = [1, 1]} : vector<1x128xf32> to vector<1x16xf32>
    %35 = vector.extract_strided_slice %26 {offsets = [0, 32], sizes = [1, 16], strides = [1, 1]} : vector<1x128xf32> to vector<1x16xf32>
    %36 = vector.extract_strided_slice %27 {offsets = [0, 32], sizes = [1, 16], strides = [1, 1]} : vector<1x128xf32> to vector<1x16xf32>
    %37 = vector.extract_strided_slice %28 {offsets = [0, 32], sizes = [1, 16], strides = [1, 1]} : vector<1x128xf32> to vector<1x16xf32>
    %38 = vector.extract_strided_slice %26 {offsets = [0, 48], sizes = [1, 16], strides = [1, 1]} : vector<1x128xf32> to vector<1x16xf32>
    %39 = vector.extract_strided_slice %27 {offsets = [0, 48], sizes = [1, 16], strides = [1, 1]} : vector<1x128xf32> to vector<1x16xf32>
    %40 = vector.extract_strided_slice %28 {offsets = [0, 48], sizes = [1, 16], strides = [1, 1]} : vector<1x128xf32> to vector<1x16xf32>
    %41 = vector.extract_strided_slice %26 {offsets = [0, 64], sizes = [1, 16], strides = [1, 1]} : vector<1x128xf32> to vector<1x16xf32>
    %42 = vector.extract_strided_slice %27 {offsets = [0, 64], sizes = [1, 16], strides = [1, 1]} : vector<1x128xf32> to vector<1x16xf32>
    %43 = vector.extract_strided_slice %28 {offsets = [0, 64], sizes = [1, 16], strides = [1, 1]} : vector<1x128xf32> to vector<1x16xf32>
    %44 = vector.extract_strided_slice %26 {offsets = [0, 80], sizes = [1, 16], strides = [1, 1]} : vector<1x128xf32> to vector<1x16xf32>
    %45 = vector.extract_strided_slice %27 {offsets = [0, 80], sizes = [1, 16], strides = [1, 1]} : vector<1x128xf32> to vector<1x16xf32>
    %46 = vector.extract_strided_slice %28 {offsets = [0, 80], sizes = [1, 16], strides = [1, 1]} : vector<1x128xf32> to vector<1x16xf32>
    %47 = vector.extract_strided_slice %26 {offsets = [0, 96], sizes = [1, 16], strides = [1, 1]} : vector<1x128xf32> to vector<1x16xf32>
    %48 = vector.extract_strided_slice %27 {offsets = [0, 96], sizes = [1, 16], strides = [1, 1]} : vector<1x128xf32> to vector<1x16xf32>
    %49 = vector.extract_strided_slice %28 {offsets = [0, 96], sizes = [1, 16], strides = [1, 1]} : vector<1x128xf32> to vector<1x16xf32>
    %50 = vector.extract_strided_slice %26 {offsets = [0, 112], sizes = [1, 16], strides = [1, 1]} : vector<1x128xf32> to vector<1x16xf32>
    %51 = vector.extract_strided_slice %27 {offsets = [0, 112], sizes = [1, 16], strides = [1, 1]} : vector<1x128xf32> to vector<1x16xf32>
    %52 = vector.extract_strided_slice %28 {offsets = [0, 112], sizes = [1, 16], strides = [1, 1]} : vector<1x128xf32> to vector<1x16xf32>
    %53 = tpu.concatenate %29, %30, %31, %32, %33, %34, %35, %36, %37, %38, %39, %40, %41, %42, %43, %44 in 1 : vector<1x16xf32>, vector<1x16xf32>, vector<1x16xf32>, vector<1x16xf32>, vector<1x16xf32>, vector<1x16xf32>, vector<1x16xf32>, vector<1x16xf32>, vector<1x16xf32>, vector<1x16xf32>, vector<1x16xf32>, vector<1x16xf32>, vector<1x16xf32>, vector<1x16xf32>, vector<1x16xf32>, vector<1x16xf32> -> vector<1x256xf32>
    %54 = tpu.concatenate %45, %46, %47, %48, %49, %50, %51, %52 in 1 : vector<1x16xf32>, vector<1x16xf32>, vector<1x16xf32>, vector<1x16xf32>, vector<1x16xf32>, vector<1x16xf32>, vector<1x16xf32>, vector<1x16xf32> -> vector<1x128xf32>
    %55 = tpu.concatenate %53, %54 in 1 : vector<1x256xf32>, vector<1x128xf32> -> vector<1x384xf32>
    %c0_12 = arith.constant 0 : index
    %c0_13 = arith.constant 0 : index
    %56 = vector.load %arg6[%c0_12, %c0_13] : memref<1x384xf32, #tpu.memory_space<vmem>>, vector<1x384xf32>
    tpu.vector_store %arg6[%c0_12, %c0_13], %55 {strides = array<i32>} : memref<1x384xf32, #tpu.memory_space<vmem>>, vector<1x384xf32>,
    return
  }
  func.func @transform_0(%arg0: i32) -> (i32, i32) {
    %c0_i32 = arith.constant 0 : i32
    %c0_i32_0 = arith.constant 0 : i32
    return %arg0, %c0_i32 : i32, i32
  }
  func.func @transform_1(%arg0: i32) -> (i32, i32) {
    %c0_i32 = arith.constant 0 : i32
    %c0_i32_0 = arith.constant 0 : i32
    %c0_i32_1 = arith.constant 0 : i32
    return %c0_i32, %c0_i32_0 : i32, i32
  }
  func.func @transform_2(%arg0: i32) -> (i32, i32) {
    %c0_i32 = arith.constant 0 : i32
    %c0_i32_0 = arith.constant 0 : i32
    %c0_i32_1 = arith.constant 0 : i32
    return %c0_i32, %c0_i32_0 : i32, i32
  }
  func.func @transform_3(%arg0: i32) -> (i32, i32) {
    %c0_i32 = arith.constant 0 : i32
    %c0_i32_0 = arith.constant 0 : i32
    %c0_i32_1 = arith.constant 0 : i32
    return %c0_i32, %c0_i32_0 : i32, i32
  }
  func.func @transform_4(%arg0: i32) -> (i32, i32) {
    %c0_i32 = arith.constant 0 : i32
    %c0_i32_0 = arith.constant 0 : i32
    %c0_i32_1 = arith.constant 0 : i32
    return %c0_i32, %c0_i32_0 : i32, i32
  }
  func.func @transform_5(%arg0: i32) -> (i32, i32) {
    %c0_i32 = arith.constant 0 : i32
    %c0_i32_0 = arith.constant 0 : i32
    return %arg0, %c0_i32 : i32, i32
  }
}

</mosaic_0001>

<llo_original>
// kernel: tpu_custom_call.1
$region0: #{tpu_custom_call.1}
  #allocation0 [shape = 'u32[]', space=smem, size = 0x4, offset = 0x4, fixed_abs, tag = 'smem constant byte address 0x4 - core index']
  #allocation1 [shape = 'u32[72,128]{1,0:T(1,128)}', space=vmem, size = 0x9000, scoped, tag = 'internal scratch']
  %s0 = inlined_call_operand.hbm [shape: f32[1,32], index: 0, kind: input, shape index: {}]
  %s1 = inlined_call_operand.hbm [shape: f32[32,256], index: 1, kind: input, shape index: {}]
  %s2 = inlined_call_operand.hbm [shape: f32[1,256], index: 2, kind: input, shape index: {}]
  %s3 = inlined_call_operand.hbm [shape: f32[256,384], index: 3, kind: input, shape index: {}]
  %s4 = inlined_call_operand.vmem [shape: f32[1,384], index: 4, kind: input, shape index: {}]
  %s5 = inlined_call_operand.hbm [shape: f32[1,384], index: 5, kind: output, shape index: {}]
  %s6 = sld [smem:[#allocation0]]
  $region46: #{tpu_custom_call.1} parent=0
    _
  %s8 = ssub.s32 1, %s6
  %s9 = scalar_select 0, %s8, %s6
  $region1: #{tpu_custom_call.1} parent=0
    #allocation2 [shape = 'u8[512]{0}', space=vmem, size = 0x400, scoped, tag = 'input window, operand 0, single buffered']
    #allocation3 [shape = 's32[1]{0}', space=sflag, size = 0x4, scoped, tag = 'scoped memory for tpu_custom_call.1']
    #allocation4 [shape = 's32[1]{0}', space=sflag, size = 0x4, scoped, tag = 'scoped memory for tpu_custom_call.1']
    #allocation5 [shape = 'u8[32768]{0}', space=vmem, size = 0x8000, scoped, tag = 'input window, operand 1, single buffered']
    #allocation6 [shape = 's32[1]{0}', space=sflag, size = 0x4, scoped, tag = 'scoped memory for tpu_custom_call.1']
    #allocation7 [shape = 'u8[1024]{0}', space=vmem, size = 0x400, scoped, tag = 'input window, operand 2, single buffered']
    #allocation8 [shape = 'u8[393216]{0}', space=vmem, size = 0x60000, scoped, tag = 'input window, operand 3, single buffered']
    #allocation9 [shape = 's32[1]{0}', space=sflag, size = 0x4, scoped, tag = 'scoped memory for tpu_custom_call.1']
    #allocation10 [shape = 'u8[1536]{0}', space=vmem, size = 0x800, scoped, tag = 'output window, operand 0, single buffered']
    %10 = vsyncpa [#allocation3], 0
    %11 = vsyncpa [#allocation6], 0
    %12 = vsyncpa [#allocation9], 0
    %13 = vsyncpa [#allocation4], 0
    // Predicated region
    $region2: #{tpu_custom_call.1} parent=1 // pred_check
      _
    $region3: #{tpu_custom_call.1} parent=1 // pred_check_branch
      %15 = sbr.rel (0) target = $region5
    $region4: #{tpu_custom_call.1} parent=1 // pred_region
      %17 = vsyncadd [#allocation3], 0
      %s19 = sshll.u32 %s0, 4
      %s20 = int_to_ptr.hbm [resolvable:$true] %s19
      %s21 = sshll.u32 [#allocation2], 4
      %s22 = int_to_ptr.vmem [resolvable:$true] %s21
      %24 = dma.hbm_to_vmem [thread:$0]  %s20, 16, %s22, [#allocation3]
    $region5: #{tpu_custom_call.1} parent=1 // pred_fallthru
      _
    // Predicated region
    $region6: #{tpu_custom_call.1} parent=1 // pred_check
      _
    $region7: #{tpu_custom_call.1} parent=1 // pred_check_branch
      %26 = sbr.rel (0) target = $region9
    $region8: #{tpu_custom_call.1} parent=1 // pred_region
      %28 = vsyncadd [#allocation6], 0
      %s29 = sshll.u32 %s1, 4
      %s30 = int_to_ptr.hbm [resolvable:$true] %s29
      %s31 = sshll.u32 [#allocation5], 4
      %s32 = int_to_ptr.vmem [resolvable:$true] %s31
      %37 = dma.hbm_to_vmem [thread:$0]  %s30, 1024, %s32, [#allocation6], 256, 256, 16
    $region9: #{tpu_custom_call.1} parent=1 // pred_fallthru
      _
    // Predicated region
    $region10: #{tpu_custom_call.1} parent=1 // pred_check
      _
    $region11: #{tpu_custom_call.1} parent=1 // pred_check_branch
      %39 = sbr.rel (0) target = $region13
    $region12: #{tpu_custom_call.1} parent=1 // pred_region
      %41 = vsyncadd [#allocation6], 0
      %s43 = sshll.u32 %s2, 4
      %s44 = int_to_ptr.hbm [resolvable:$true] %s43
      %s45 = sshll.u32 [#allocation7], 4
      %s46 = int_to_ptr.vmem [resolvable:$true] %s45
      %48 = dma.hbm_to_vmem [thread:$0]  %s44, 32, %s46, [#allocation6]
    $region13: #{tpu_custom_call.1} parent=1 // pred_fallthru
      _
    // Predicated region
    $region14: #{tpu_custom_call.1} parent=1 // pred_check
      _
    $region15: #{tpu_custom_call.1} parent=1 // pred_check_branch
      %50 = sbr.rel (0) target = $region17
    $region16: #{tpu_custom_call.1} parent=1 // pred_region
      %52 = vsyncadd [#allocation9], 0
      %s53 = sshll.u32 %s3, 4
      %s54 = int_to_ptr.hbm [resolvable:$true] %s53
      %s55 = sshll.u32 [#allocation8], 4
      %s56 = int_to_ptr.vmem [resolvable:$true] %s55
      %61 = dma.hbm_to_vmem [thread:$0]  %s54, 12288, %s56, [#allocation9], 384, 384, 24
    $region17: #{tpu_custom_call.1} parent=1 // pred_fallthru
      _
    // Predicated region
    $region18: #{tpu_custom_call.1} parent=1 // pred_check
      _
    $region19: #{tpu_custom_call.1} parent=1 // pred_check_branch
      %63 = sbr.rel (0) target = $region21
    $region20: #{tpu_custom_call.1} parent=1 // pred_region
      _
    $region21: #{tpu_custom_call.1} parent=1 // pred_fallthru
      _
    // Predicated region
    $region22: #{tpu_custom_call.1} parent=1 // pred_check
      _
    $region23: #{tpu_custom_call.1} parent=1 // pred_check_branch
      %65 = sbr.rel (0) target = $region25
    $region24: #{tpu_custom_call.1} parent=1 // pred_region
      %67 = dma.done [#allocation3], 16
    $region25: #{tpu_custom_call.1} parent=1 // pred_fallthru
      _
    // Predicated region
    $region26: #{tpu_custom_call.1} parent=1 // pred_check
      _
    $region27: #{tpu_custom_call.1} parent=1 // pred_check_branch
      %69 = sbr.rel (0) target = $region29
    $region28: #{tpu_custom_call.1} parent=1 // pred_region
      %71 = dma.done [#allocation6], 1024
    $region29: #{tpu_custom_call.1} parent=1 // pred_fallthru
      _
    // Predicated region
    $region30: #{tpu_custom_call.1} parent=1 // pred_check
      _
    $region31: #{tpu_custom_call.1} parent=1 // pred_check_branch
      %73 = sbr.rel (0) target = $region33
    $region32: #{tpu_custom_call.1} parent=1 // pred_region
      %75 = dma.done [#allocation6], 32
    $region33: #{tpu_custom_call.1} parent=1 // pred_fallthru
      _
    // Predicated region
    $region34: #{tpu_custom_call.1} parent=1 // pred_check
      _
    $region35: #{tpu_custom_call.1} parent=1 // pred_check_branch
      %77 = sbr.rel (0) target = $region37
    $region36: #{tpu_custom_call.1} parent=1 // pred_region
      %79 = dma.done [#allocation9], 12288
    $region37: #{tpu_custom_call.1} parent=1 // pred_fallthru
      _
    %v80 = vld [vmem:[#allocation2] sm:$0x1]
    %v81 = vld [vmem:[#allocation5] sm:$0xff]
    %v82 = vld [vmem:[#allocation5 + $0x8] sm:$0xff]
    %v83 = vld [vmem:[#allocation5 + $0x10] sm:$0xff]
    %v84 = vld [vmem:[#allocation5 + $0x18] sm:$0xff]
    %v85 = vld [vmem:[#allocation5 + $0x20] sm:$0xff]
    %v86 = vld [vmem:[#allocation5 + $0x28] sm:$0xff]
    %v87 = vld [vmem:[#allocation5 + $0x30] sm:$0xff]
    %v88 = vld [vmem:[#allocation5 + $0x38] sm:$0xff]
    %v89 = vld [vmem:[#allocation7] sm:$0x3]
    %v91 = vperm.slane %v89, 0
    %v92 = vperm.slane %v89, 1
    %vm95 = vcmask 261120
    %v97 = vsel %vm95, %v80, 0
    %99 = vmatpush.msra.mxu0 0.0
    %100 = vmatpush.msra.mxu0 0.0
    %101 = vmatpush.msra.mxu0 0.0
    %102 = vmatpush.msra.mxu0 0.0
    %103 = vmatpush.msra.mxu0 0.0
    %104 = vmatpush.msra.mxu0 0.0
    %105 = vmatpush.msra.mxu0 0.0
    %106 = vmatpush.msra.mxu0 0.0
    %107 = vmatpush.msra.mxu0 0.0
    %108 = vmatpush.msra.mxu0 0.0
    %109 = vmatpush.msra.mxu0 0.0
    %110 = vmatpush.msra.mxu0 0.0
    %111 = vmatpush.msra.mxu0 %v87
    %112 = vmatpush.msra.mxu0 %v85
    %113 = vmatpush.msra.mxu0 %v83
    %114 = vmatpush.msra.mxu0 %v81
    %115 = vmatmul.f32.gmra.mxu0 %v97
    %v116 = vpop.f32.mrf.mxu0
    %v117 = vadd.f32 %v91, %v116
    %118 = vdwg.mxu0
    %119 = vmatpush.msra.mxu0 0.0
    %120 = vmatpush.msra.mxu0 0.0
    %121 = vmatpush.msra.mxu0 0.0
    %122 = vmatpush.msra.mxu0 0.0
    %123 = vmatpush.msra.mxu0 0.0
    %124 = vmatpush.msra.mxu0 0.0
    %125 = vmatpush.msra.mxu0 0.0
    %126 = vmatpush.msra.mxu0 0.0
    %127 = vmatpush.msra.mxu0 0.0
    %128 = vmatpush.msra.mxu0 0.0
    %129 = vmatpush.msra.mxu0 0.0
    %130 = vmatpush.msra.mxu0 0.0
    %131 = vmatpush.msra.mxu0 %v88
    %132 = vmatpush.msra.mxu0 %v86
    %133 = vmatpush.msra.mxu0 %v84
    %134 = vmatpush.msra.mxu0 %v82
    %135 = vmatmul.f32.gmra.mxu0 %v97
    %v136 = vpop.f32.mrf.mxu0
    %v137 = vadd.f32 %v92, %v136
    %138 = vdwg.mxu0
    %v139 = vmax.f32 %v117, 0.0
    %v140 = vmax.f32 %v137, 0.0
    %v141 = vld [vmem:[#allocation8] sm:$0xff]
    %v142 = vld [vmem:[#allocation8 + $0x8] sm:$0xff]
    %v143 = vld [vmem:[#allocation8 + $0x10] sm:$0xff]
    %v144 = vld [vmem:[#allocation8 + $0x18] sm:$0xff]
    %v145 = vld [vmem:[#allocation8 + $0x20] sm:$0xff]
    %v146 = vld [vmem:[#allocation8 + $0x28] sm:$0xff]
    %v147 = vld [vmem:[#allocation8 + $0x30] sm:$0xff]
    %v148 = vld [vmem:[#allocation8 + $0x38] sm:$0xff]
    %v149 = vld [vmem:[#allocation8 + $0x40] sm:$0xff]
    %v150 = vld [vmem:[#allocation8 + $0x48] sm:$0xff]
    %v151 = vld [vmem:[#allocation8 + $0x50] sm:$0xff]
    %v152 = vld [vmem:[#allocation8 + $0x58] sm:$0xff]
    %v153 = vld [vmem:[#allocation8 + $0x60] sm:$0xff]
    %v154 = vld [vmem:[#allocation8 + $0x68] sm:$0xff]
    %v155 = vld [vmem:[#allocation8 + $0x70] sm:$0xff]
    %v156 = vld [vmem:[#allocation8 + $0x78] sm:$0xff]
    %v157 = vld [vmem:[#allocation8 + $0x80] sm:$0xff]
    %v158 = vld [vmem:[#allocation8 + $0x88] sm:$0xff]
    %v159 = vld [vmem:[#allocation8 + $0x90] sm:$0xff]
    %v160 = vld [vmem:[#allocation8 + $0x98] sm:$0xff]
    %v161 = vld [vmem:[#allocation8 + $0xa0] sm:$0xff]
    %v162 = vld [vmem:[#allocation8 + $0xa8] sm:$0xff]
    %v163 = vld [vmem:[#allocation8 + $0xb0] sm:$0xff]
    %v164 = vld [vmem:[#allocation8 + $0xb8] sm:$0xff]
    %v165 = vld [vmem:[#allocation8 + $0xc0] sm:$0xff]
    %v166 = vld [vmem:[#allocation8 + $0xc8] sm:$0xff]
    %v167 = vld [vmem:[#allocation8 + $0xd0] sm:$0xff]
    %v168 = vld [vmem:[#allocation8 + $0xd8] sm:$0xff]
    %v169 = vld [vmem:[#allocation8 + $0xe0] sm:$0xff]
    %v170 = vld [vmem:[#allocation8 + $0xe8] sm:$0xff]
    %v171 = vld [vmem:[#allocation8 + $0xf0] sm:$0xff]
    %v172 = vld [vmem:[#allocation8 + $0xf8] sm:$0xff]
    %v173 = vld [vmem:[#allocation8 + $0x100] sm:$0xff]
    %v174 = vld [vmem:[#allocation8 + $0x108] sm:$0xff]
    %v175 = vld [vmem:[#allocation8 + $0x110] sm:$0xff]
    %v176 = vld [vmem:[#allocation8 + $0x118] sm:$0xff]
    %v177 = vld [vmem:[#allocation8 + $0x120] sm:$0xff]
    %v178 = vld [vmem:[#allocation8 + $0x128] sm:$0xff]
    %v179 = vld [vmem:[#allocation8 + $0x130] sm:$0xff]
    %v180 = vld [vmem:[#allocation8 + $0x138] sm:$0xff]
    %v181 = vld [vmem:[#allocation8 + $0x140] sm:$0xff]
    %v182 = vld [vmem:[#allocation8 + $0x148] sm:$0xff]
    %v183 = vld [vmem:[#allocation8 + $0x150] sm:$0xff]
    %v184 = vld [vmem:[#allocation8 + $0x158] sm:$0xff]
    %v185 = vld [vmem:[#allocation8 + $0x160] sm:$0xff]
    %v186 = vld [vmem:[#allocation8 + $0x168] sm:$0xff]
    %v187 = vld [vmem:[#allocation8 + $0x170] sm:$0xff]
    %v188 = vld [vmem:[#allocation8 + $0x178] sm:$0xff]
    %v189 = vld [vmem:[#allocation8 + $0x180] sm:$0xff]
    %v190 = vld [vmem:[#allocation8 + $0x188] sm:$0xff]
    %v191 = vld [vmem:[#allocation8 + $0x190] sm:$0xff]
    %v192 = vld [vmem:[#allocation8 + $0x198] sm:$0xff]
    %v193 = vld [vmem:[#allocation8 + $0x1a0] sm:$0xff]
    %v194 = vld [vmem:[#allocation8 + $0x1a8] sm:$0xff]
    %v195 = vld [vmem:[#allocation8 + $0x1b0] sm:$0xff]
    %v196 = vld [vmem:[#allocation8 + $0x1b8] sm:$0xff]
    %v197 = vld [vmem:[#allocation8 + $0x1c0] sm:$0xff]
    %v198 = vld [vmem:[#allocation8 + $0x1c8] sm:$0xff]
    %v199 = vld [vmem:[#allocation8 + $0x1d0] sm:$0xff]
    %v200 = vld [vmem:[#allocation8 + $0x1d8] sm:$0xff]
    %v201 = vld [vmem:[#allocation8 + $0x1e0] sm:$0xff]
    %v202 = vld [vmem:[#allocation8 + $0x1e8] sm:$0xff]
    %v203 = vld [vmem:[#allocation8 + $0x1f0] sm:$0xff]
    %v204 = vld [vmem:[#allocation8 + $0x1f8] sm:$0xff]
    %v205 = vld [vmem:[#allocation8 + $0x200] sm:$0xff]
    %v206 = vld [vmem:[#allocation8 + $0x208] sm:$0xff]
    %v207 = vld [vmem:[#allocation8 + $0x210] sm:$0xff]
    %v208 = vld [vmem:[#allocation8 + $0x218] sm:$0xff]
    %v209 = vld [vmem:[#allocation8 + $0x220] sm:$0xff]
    %v210 = vld [vmem:[#allocation8 + $0x228] sm:$0xff]
    %v211 = vld [vmem:[#allocation8 + $0x230] sm:$0xff]
    %v212 = vld [vmem:[#allocation8 + $0x238] sm:$0xff]
    %v213 = vld [vmem:[#allocation8 + $0x240] sm:$0xff]
    %v214 = vld [vmem:[#allocation8 + $0x248] sm:$0xff]
    %v215 = vld [vmem:[#allocation8 + $0x250] sm:$0xff]
    %v216 = vld [vmem:[#allocation8 + $0x258] sm:$0xff]
    %v217 = vld [vmem:[#allocation8 + $0x260] sm:$0xff]
    %v218 = vld [vmem:[#allocation8 + $0x268] sm:$0xff]
    %v219 = vld [vmem:[#allocation8 + $0x270] sm:$0xff]
    %v220 = vld [vmem:[#allocation8 + $0x278] sm:$0xff]
    %v221 = vld [vmem:[#allocation8 + $0x280] sm:$0xff]
    %v222 = vld [vmem:[#allocation8 + $0x288] sm:$0xff]
    %v223 = vld [vmem:[#allocation8 + $0x290] sm:$0xff]
    %v224 = vld [vmem:[#allocation8 + $0x298] sm:$0xff]
    %v225 = vld [vmem:[#allocation8 + $0x2a0] sm:$0xff]
    %v226 = vld [vmem:[#allocation8 + $0x2a8] sm:$0xff]
    %v227 = vld [vmem:[#allocation8 + $0x2b0] sm:$0xff]
    %v228 = vld [vmem:[#allocation8 + $0x2b8] sm:$0xff]
    %v229 = vld [vmem:[#allocation8 + $0x2c0] sm:$0xff]
    %v230 = vld [vmem:[#allocation8 + $0x2c8] sm:$0xff]
    %v231 = vld [vmem:[#allocation8 + $0x2d0] sm:$0xff]
    %v232 = vld [vmem:[#allocation8 + $0x2d8] sm:$0xff]
    %v233 = vld [vmem:[#allocation8 + $0x2e0] sm:$0xff]
    %v234 = vld [vmem:[#allocation8 + $0x2e8] sm:$0xff]
    %v235 = vld [vmem:[#allocation8 + $0x2f0] sm:$0xff]
    %v236 = vld [vmem:[#allocation8 + $0x2f8] sm:$0xff]
    %v237 = vld [vmem:[%s4] sm:$0x7]
    %v239 = vperm.slane %v237, 0
    %v240 = vperm.slane %v237, 1
    %v241 = vperm.slane %v237, 2
    %245 = vmatpush.msra.mxu0 %v186
    %246 = vmatpush.msra.mxu0 %v183
    %247 = vmatpush.msra.mxu0 %v180
    %248 = vmatpush.msra.mxu0 %v177
    %249 = vmatpush.msra.mxu0 %v174
    %250 = vmatpush.msra.mxu0 %v171
    %251 = vmatpush.msra.mxu0 %v168
    %252 = vmatpush.msra.mxu0 %v165
    %253 = vmatpush.msra.mxu0 %v162
    %254 = vmatpush.msra.mxu0 %v159
    %255 = vmatpush.msra.mxu0 %v156
    %256 = vmatpush.msra.mxu0 %v153
    %257 = vmatpush.msra.mxu0 %v150
    %258 = vmatpush.msra.mxu0 %v147
    %259 = vmatpush.msra.mxu0 %v144
    %260 = vmatpush.msra.mxu0 %v141
    %261 = vmatmul.f32.gmra.mxu0 %v139
    %v262 = vpop.f32.mrf.mxu0
    %v263 = vadd.f32 %v239, %v262
    %264 = vdwg.mxu0
    %265 = vmatpush.msra.mxu0 %v234
    %266 = vmatpush.msra.mxu0 %v231
    %267 = vmatpush.msra.mxu0 %v228
    %268 = vmatpush.msra.mxu0 %v225
    %269 = vmatpush.msra.mxu0 %v222
    %270 = vmatpush.msra.mxu0 %v219
    %271 = vmatpush.msra.mxu0 %v216
    %272 = vmatpush.msra.mxu0 %v213
    %273 = vmatpush.msra.mxu0 %v210
    %274 = vmatpush.msra.mxu0 %v207
    %275 = vmatpush.msra.mxu0 %v204
    %276 = vmatpush.msra.mxu0 %v201
    %277 = vmatpush.msra.mxu0 %v198
    %278 = vmatpush.msra.mxu0 %v195
    %279 = vmatpush.msra.mxu0 %v192
    %280 = vmatpush.msra.mxu0 %v189
    %281 = vmatmul.f32.gmra.mxu0 %v140
    %v282 = vpop.f32.mrf.mxu0
    %v283 = vadd.f32 %v263, %v282
    %284 = vdwg.mxu0
    %285 = vmatpush.msra.mxu0 %v187
    %286 = vmatpush.msra.mxu0 %v184
    %287 = vmatpush.msra.mxu0 %v181
    %288 = vmatpush.msra.mxu0 %v178
    %289 = vmatpush.msra.mxu0 %v175
    %290 = vmatpush.msra.mxu0 %v172
    %291 = vmatpush.msra.mxu0 %v169
    %292 = vmatpush.msra.mxu0 %v166
    %293 = vmatpush.msra.mxu0 %v163
    %294 = vmatpush.msra.mxu0 %v160
    %295 = vmatpush.msra.mxu0 %v157
    %296 = vmatpush.msra.mxu0 %v154
    %297 = vmatpush.msra.mxu0 %v151
    %298 = vmatpush.msra.mxu0 %v148
    %299 = vmatpush.msra.mxu0 %v145
    %300 = vmatpush.msra.mxu0 %v142
    %301 = vmatmul.f32.gmra.mxu0 %v139
    %v302 = vpop.f32.mrf.mxu0
    %v303 = vadd.f32 %v240, %v302
    %304 = vdwg.mxu0
    %305 = vmatpush.msra.mxu0 %v235
    %306 = vmatpush.msra.mxu0 %v232
    %307 = vmatpush.msra.mxu0 %v229
    %308 = vmatpush.msra.mxu0 %v226
    %309 = vmatpush.msra.mxu0 %v223
    %310 = vmatpush.msra.mxu0 %v220
    %311 = vmatpush.msra.mxu0 %v217
    %312 = vmatpush.msra.mxu0 %v214
    %313 = vmatpush.msra.mxu0 %v211
    %314 = vmatpush.msra.mxu0 %v208
    %315 = vmatpush.msra.mxu0 %v205
    %316 = vmatpush.msra.mxu0 %v202
    %317 = vmatpush.msra.mxu0 %v199
    %318 = vmatpush.msra.mxu0 %v196
    %319 = vmatpush.msra.mxu0 %v193
    %320 = vmatpush.msra.mxu0 %v190
    %321 = vmatmul.f32.gmra.mxu0 %v140
    %v322 = vpop.f32.mrf.mxu0
    %v323 = vadd.f32 %v303, %v322
    %324 = vdwg.mxu0
    %325 = vmatpush.msra.mxu0 %v188
    %326 = vmatpush.msra.mxu0 %v185
    %327 = vmatpush.msra.mxu0 %v182
    %328 = vmatpush.msra.mxu0 %v179
    %329 = vmatpush.msra.mxu0 %v176
    %330 = vmatpush.msra.mxu0 %v173
    %331 = vmatpush.msra.mxu0 %v170
    %332 = vmatpush.msra.mxu0 %v167
    %333 = vmatpush.msra.mxu0 %v164
    %334 = vmatpush.msra.mxu0 %v161
    %335 = vmatpush.msra.mxu0 %v158
    %336 = vmatpush.msra.mxu0 %v155
    %337 = vmatpush.msra.mxu0 %v152
    %338 = vmatpush.msra.mxu0 %v149
    %339 = vmatpush.msra.mxu0 %v146
    %340 = vmatpush.msra.mxu0 %v143
    %341 = vmatmul.f32.gmra.mxu0 %v139
    %v342 = vpop.f32.mrf.mxu0
    %v343 = vadd.f32 %v241, %v342
    %344 = vdwg.mxu0
    %345 = vmatpush.msra.mxu0 %v236
    %346 = vmatpush.msra.mxu0 %v233
    %347 = vmatpush.msra.mxu0 %v230
    %348 = vmatpush.msra.mxu0 %v227
    %349 = vmatpush.msra.mxu0 %v224
    %350 = vmatpush.msra.mxu0 %v221
    %351 = vmatpush.msra.mxu0 %v218
    %352 = vmatpush.msra.mxu0 %v215
    %353 = vmatpush.msra.mxu0 %v212
    %354 = vmatpush.msra.mxu0 %v209
    %355 = vmatpush.msra.mxu0 %v206
    %356 = vmatpush.msra.mxu0 %v203
    %357 = vmatpush.msra.mxu0 %v200
    %358 = vmatpush.msra.mxu0 %v197
    %359 = vmatpush.msra.mxu0 %v194
    %360 = vmatpush.msra.mxu0 %v191
    %361 = vmatmul.f32.gmra.mxu0 %v140
    %v362 = vpop.f32.mrf.mxu0
    %v363 = vadd.f32 %v343, %v362
    %364 = vdwg.mxu0
    %v365 = vmax.f32 %v283, %v323
    %v366 = vmax.f32 %v365, %v363
    %v367 = vsub.f32 %v283, %v366
    %v368 = vmul.f32 %v367, 1.442695
    %v369 = vpow.pop %v368
    %v370 = vsub.f32 %v323, %v366
    %v371 = vmul.f32 %v370, 1.442695
    %v372 = vpow.pop %v371
    %v373 = vsub.f32 %v363, %v366
    %v374 = vmul.f32 %v373, 1.442695
    %v375 = vpow.pop %v374
    %v376 = vadd.f32 %v369, %v372
    %v377 = vadd.f32 %v376, %v375
    %v378 = vrcp.pop %v377
    %v379 = vmul.f32 %v377, %v378
    %v380 = vsub.f32 1.0, %v379
    %v381 = vmul.f32 %v378, %v380
    %v382 = vadd.f32 %v378, %v381
    %vm383 = vweird.f32 %v377
    %vm384 = vweird.f32 %v378
    %vm385 = vmor %vm383, %vm384
    %v386 = vsel %vm385, %v378, %v382
    %v387 = vand.u32 2147483647, %v377
    %vm388 = vcmp.eq.f32.partialorder %v387, 8.507059e+37
    %v389 = vand.u32 %v377, 2147483648
    %v390 = vor.u32 1.1754944e-38, %v389
    %v391 = vsel %vm388, %v390, %v386
    %v392 = vmul.f32 1.0, %v391
    %v393 = vmul.f32 %v369, %v392
    %v394 = vmul.f32 %v372, %v392
    %v395 = vmul.f32 %v375, %v392
    %397 = vrot.lane.b32.xlu0 %v394, 16
    %v398 = vpop.permute.xlu0 %397
    %401 = vrot.lane.b32.xlu0 %v395, 32
    %v402 = vpop.permute.xlu0 %401
    %405 = vrot.lane.b32.xlu0 %v393, 32
    %v406 = vpop.permute.xlu0 %405
    %408 = vrot.lane.b32.xlu0 %v394, 48
    %v409 = vpop.permute.xlu0 %408
    %411 = vrot.lane.b32.xlu0 %v395, 64
    %v412 = vpop.permute.xlu0 %411
    %414 = vrot.lane.b32.xlu0 %v393, 64
    %v415 = vpop.permute.xlu0 %414
    %417 = vrot.lane.b32.xlu0 %v394, 80
    %v418 = vpop.permute.xlu0 %417
    %420 = vrot.lane.b32.xlu0 %v395, 96
    %v421 = vpop.permute.xlu0 %420
    %423 = vrot.lane.b32.xlu0 %v393, 96
    %v424 = vpop.permute.xlu0 %423
    %426 = vrot.lane.b32.xlu0 %v394, 112
    %v427 = vpop.permute.xlu0 %426
    %vm429 = vcmask 130048
    %v430 = vsel %vm429, %v393, %v398
    %v431 = vsel %vm95, %v430, %v402
    %vm432 = vcmask 392192
    %v433 = vsel %vm432, %v431, %v406
    %vm434 = vcmask 523264
    %v435 = vsel %vm434, %v433, %v409
    %vm436 = vcmask 654336
    %v437 = vsel %vm436, %v435, %v412
    %vm438 = vcmask 785408
    %v439 = vsel %vm438, %v437, %v415
    %vm440 = vcmask 916480
    %v441 = vsel %vm440, %v439, %v418
    %v442 = vsel %vm429, %v421, %v424
    %v443 = vsel %vm95, %v442, %v427
    %v444 = vsel %vm432, %v443, %v395
    %v445 = vsel %vm434, %v444, %v393
    %v446 = vsel %vm436, %v445, %v398
    %v447 = vsel %vm438, %v446, %v402
    %v448 = vsel %vm440, %v447, %v406
    %v449 = vsel %vm429, %v409, %v412
    %v450 = vsel %vm95, %v449, %v415
    %v451 = vsel %vm432, %v450, %v418
    %v452 = vsel %vm434, %v451, %v421
    %v453 = vsel %vm436, %v452, %v424
    %v454 = vsel %vm438, %v453, %v427
    %v455 = vsel %vm440, %v454, %v395
    %v459 = vrot.slane %v448, 7
    %v460 = vrot.slane %v455, 6
    %vm461 = vcmask 1040384
    %v462 = vsel %vm461, %v441, %v459
    %vm463 = vcmask 1041408
    %v464 = vsel %vm463, %v462, %v460
    %v466 = vlaneseq
    %vm467 = vcmp.ge.s32.totalorder %v466, 0
    %vm468 = vcmp.lt.s32.totalorder %v466, 384
    %vm469 = vmand %vm467, %vm468
    %470 = vst.msk [vmem:[#allocation10] sm:$0x7] %vm469, %v464
    // Predicated region
    $region38: #{tpu_custom_call.1} parent=1 // pred_check
      _
    $region39: #{tpu_custom_call.1} parent=1 // pred_check_branch
      %472 = sbr.rel (0) target = $region41
    $region40: #{tpu_custom_call.1} parent=1 // pred_region
      %474 = vsyncadd [#allocation4], 0
      %s476 = sshll.u32 [#allocation10], 4
      %s477 = int_to_ptr.vmem [resolvable:$true] %s476
      %s478 = sshll.u32 %s5, 4
      %s479 = int_to_ptr.hbm [resolvable:$true] %s478
      %481 = dma.vmem_to_hbm [thread:$0]  %s477, 48, %s479, [#allocation4]
    $region41: #{tpu_custom_call.1} parent=1 // pred_fallthru
      _
    // Predicated region
    $region42: #{tpu_custom_call.1} parent=1 // pred_check
      _
    $region43: #{tpu_custom_call.1} parent=1 // pred_check_branch
      %483 = sbr.rel (0) target = $region45
    $region44: #{tpu_custom_call.1} parent=1 // pred_region
      %485 = dma.done [#allocation4], 48
    $region45: #{tpu_custom_call.1} parent=1 // pred_fallthru
      _
    %486 = vsyncpa [#allocation3], 1
    %487 = vsyncpa [#allocation6], 1
    %488 = vsyncpa [#allocation9], 1
    %489 = vsyncpa [#allocation4], 1

</llo_original>
